<compile_context>
chip_gen: v5e
topology: v5e:2x2
jax: 0.10.0
libtpu: 0.0.40
codegen_flags: <defaults>
</compile_context>

<pallas_src>
import functools

import numpy as np
import jax
import jax.numpy as jnp
from jax import lax
from jax.experimental import pallas as pl
from jax.experimental.pallas import tpu as pltpu


# ----------------------------- Pallas kernel ---------------------------------
def embgcn_sa_kernel(x_ref, adj_ref, wq_ref, bq_ref, wk_ref, bk_ref, wv_ref,
                     out_ref, *, nb, N, C_out, approx_softmax):
    # x_ref:   (nb*N, C_in)   nb batches folded into the M dimension
    # adj_ref: (N, N)         precomputed softmax(sym_norm_Adj(A))
    # w*_ref:  (C_in, C_out)  projection weights (lane-0 aligned outputs)
    # b*_ref:  (1, C_out)
    # out_ref: (nb, N, C_out)
    adj = adj_ref[...]
    x = x_ref[...]

    # Three separate projections: each result starts at lane 0, so the per-batch
    # q/k/v row slices below are pure sublane slices (no cross-lane extraction).
    q_all = jnp.dot(x, wq_ref[...], preferred_element_type=jnp.float32) + bq_ref[...]
    k_all = jnp.dot(x, wk_ref[...], preferred_element_type=jnp.float32) + bk_ref[...]
    v_all = jnp.dot(x, wv_ref[...], preferred_element_type=jnp.float32)

    # nb is tiny and static -> unrolled Python loop; every matmul stays 2-D.
    for b in range(nb):
        rows = slice(b * N, (b + 1) * N)
        q = q_all[rows]
        k = k_all[rows]
        v = v_all[rows]

        # S = Q @ K^T: contract the channel dim of both operands directly
        # (no explicit K transpose materialized before the MXU; verified form).
        s = lax.dot_general(q, k,
                            dimension_numbers=(((1,), (1,)), ((), ())),
                            preferred_element_type=jnp.float32)       # (N, N)

        # softmax over dim=1 of (B, N, N) == axis 0 of this per-batch slice
        # (i.e. per-COLUMN statistics).
        m = jnp.max(s, axis=0, keepdims=True)
        e = jnp.exp(s - m)
        denom = jnp.sum(e, axis=0, keepdims=True)
        if approx_softmax:
            p = e * pl.reciprocal(denom, approx=True)   # EUP slot, frees VALU
        else:
            p = e / denom

        # Reassociated: (S @ adj) @ V == S @ (adj @ V)  (N^2*C_out FLOPs).
        av = jnp.dot(adj, v, preferred_element_type=jnp.float32)      # (N, C_out)
        out = jnp.dot(p, av, preferred_element_type=jnp.float32)      # (N, C_out)

        out_ref[b] = jnp.maximum(out, 0.0)                            # ReLU


# ------------------------------ wrapper ---------------------------------------
def embgcn_sa_forward(x, adj_sm, wq, bq, wk, bk, wv, node_embeddings=None, *,
                      batch_grid=None, approx_softmax=True):
    """x: (B,N,C_in) f32; adj_sm: (N,N) f32; W*: (C_in,C_out); b*: (1,C_out).

    node_embeddings is accepted for API parity but unused (as in the module).
    batch_grid: if True, run grid=(B,) with parallel semantics (uses both v7x
    TensorCores); if None, choose automatically based on per-batch work size.
    """
    del node_embeddings  # unused by the PyTorch forward as well
    B, N, C_in = x.shape
    C_out = wq.shape[1]
    x_flat = x.reshape(B * N, C_in)  # view-only reshape, folds B into M

    if batch_grid is None:
        # Shard batches across TensorCores only when the per-batch work is big
        # enough to amortize the ~0.35us per-grid-step overhead (v7x win).
        batch_grid = (B >= 2) and (N * N * C_out >= (1 << 18))

    vmem = lambda: pl.BlockSpec(memory_space=pltpu.MemorySpace.VMEM)

    if not batch_grid:
        # Grid-free: a single invocation handles the whole batch (toy shapes /
        # single-TC v5e/v6e); no per-step overhead, everything fits VMEM.
        kernel = functools.partial(embgcn_sa_kernel, nb=B, N=N, C_out=C_out,
                                   approx_softmax=approx_softmax)
        return pl.pallas_call(
            kernel,
            out_shape=jax.ShapeDtypeStruct((B, N, C_out), jnp.float32),
            in_specs=[vmem()] * 7,
            out_specs=vmem(),
        )(x_flat, adj_sm, wq, bq, wk, bk, wv)

    # grid=(B,) parallel over batch: one batch per grid step, sharded across
    # TensorCores on v7x. Weights/adj use constant index_maps -> stay resident.
    kernel = functools.partial(embgcn_sa_kernel, nb=1, N=N, C_out=C_out,
                               approx_softmax=approx_softmax)
    return pl.pallas_call(
        kernel,
        out_shape=jax.ShapeDtypeStruct((B, N, C_out), jnp.float32),
        grid_spec=pltpu.PrefetchScalarGridSpec(
            num_scalar_prefetch=0,
            grid=(B,),
            in_specs=[
                pl.BlockSpec((N, C_in), lambda b: (b, 0)),      # x rows of batch b
                pl.BlockSpec((N, N), lambda b: (0, 0)),         # adj (resident)
                pl.BlockSpec((C_in, C_out), lambda b: (0, 0)),  # Wq
                pl.BlockSpec((1, C_out), lambda b: (0, 0)),     # bq
                pl.BlockSpec((C_in, C_out), lambda b: (0, 0)),  # Wk
                pl.BlockSpec((1, C_out), lambda b: (0, 0)),     # bk
                pl.BlockSpec((C_in, C_out), lambda b: (0, 0)),  # Wv
            ],
            out_specs=pl.BlockSpec((1, N, C_out), lambda b: (b, 0, 0)),
        ),
        compiler_params=pltpu.CompilerParams(
            dimension_semantics=("parallel",)),
    )(x_flat, adj_sm, wq, bq, wk, bk, wv)


# ----------------------------- setup / glue -----------------------------------
def sym_norm_adj(W):
    """Numpy port of sym_norm_Adj from the PyTorch module."""
    assert W.shape[0] == W.shape[1]
    N = W.shape[0]
    W = W + 0.5 * np.identity(N)
    D = np.diag(1.0 / np.sum(W, axis=1))
    A = np.dot(np.sqrt(D), W)
    A = np.dot(A, np.sqrt(D))
    return A


def softmax_np(x, axis):
    x = x - np.max(x, axis=axis, keepdims=True)
    e = np.exp(x)
    return e / np.sum(e, axis=axis, keepdims=True)


def reference_forward(x, adj_sm, wq, bq, wk, bk, wv):
    """Pure-JAX reference of the exact PyTorch forward semantics."""
    Q = x @ wq + bq
    K = x @ wk + bk
    V = x @ wv
    S = jnp.einsum('bnc,bmc->bnm', Q, K)
    S = jax.nn.softmax(S, axis=1)                 # dim=1 (NOT the last dim)
    S = jnp.einsum('bnm,mc->bnc', S, adj_sm)
    S = jnp.einsum('bnm,bmc->bnc', S, V)
    return jax.nn.relu(S)


if __name__ == "__main__":
    # Small shapes consistent with the module.
    B, N, C_in, C_out = 2, 16, 4, 8   # dim_in=4, dim_out=8, num_nodes=16
    cheb_k, embed_dim = 2, 4          # unused by the forward pass

    key = jax.random.PRNGKey(0)
    kx, kadj, kq, kbq, kk, kbk, kv, kemb = jax.random.split(key, 8)

    # Inputs
    x = jax.random.normal(kx, (B, N, C_in), dtype=jnp.float32)
    node_embeddings = jax.random.normal(kemb, (N, embed_dim), dtype=jnp.float32)  # unused

    # Adjacency: nonnegative, then sym_norm + F.softmax (implicit dim=1 for 2D)
    adj_raw = np.abs(np.asarray(jax.random.uniform(kadj, (N, N)))) + 0.1
    adj_sn = sym_norm_adj(adj_raw.astype(np.float64)).astype(np.float32)
    adj_sm = jnp.asarray(softmax_np(adj_sn, axis=1), dtype=jnp.float32)

    # Parameters of the Spatial_Attention_layer (Linear: y = x @ W + b)
    scale = 1.0 / np.sqrt(C_in)
    wq = jax.random.uniform(kq, (C_in, C_out), minval=-scale, maxval=scale, dtype=jnp.float32)
    bq = jax.random.uniform(kbq, (1, C_out), minval=-scale, maxval=scale, dtype=jnp.float32)
    wk = jax.random.uniform(kk, (C_in, C_out), minval=-scale, maxval=scale, dtype=jnp.float32)
    bk = jax.random.uniform(kbk, (1, C_out), minval=-scale, maxval=scale, dtype=jnp.float32)
    wv = jax.random.uniform(kv, (C_in, C_out), minval=-scale, maxval=scale, dtype=jnp.float32)

    ref = jax.block_until_ready(reference_forward(x, adj_sm, wq, bq, wk, bk, wv))

    # Default (grid-free at toy shapes; what v5e/v6e single-TC runs would use).
    out = embgcn_sa_forward(x, adj_sm, wq, bq, wk, bk, wv, node_embeddings)
    out = jax.block_until_ready(out)
    # Tolerance relaxed vs bit-exact: the kernel uses the reassociated
    # S @ (adj @ V) product and an approximate (EUP) reciprocal in the softmax.
    np.testing.assert_allclose(np.asarray(out), np.asarray(ref), rtol=1e-3, atol=1e-3)

    # Explicitly exercise the batch-parallel grid path (v7x two-TC sharding).
    out_grid = embgcn_sa_forward(x, adj_sm, wq, bq, wk, bk, wv, node_embeddings,
                                 batch_grid=True)
    out_grid = jax.block_until_ready(out_grid)
    np.testing.assert_allclose(np.asarray(out_grid), np.asarray(ref), rtol=1e-3, atol=1e-3)

    print("KERNEL_OK")
</pallas_src>

<mosaic_0001>
module attributes {stable_mosaic.version = 11 : i64} {
  func.func @embgcn_sa_kernel(%arg0: memref<32x4xf32, #tpu.memory_space<vmem>>, %arg1: memref<16x16xf32, #tpu.memory_space<vmem>>, %arg2: memref<4x8xf32, #tpu.memory_space<vmem>>, %arg3: memref<1x8xf32, #tpu.memory_space<vmem>>, %arg4: memref<4x8xf32, #tpu.memory_space<vmem>>, %arg5: memref<1x8xf32, #tpu.memory_space<vmem>>, %arg6: memref<4x8xf32, #tpu.memory_space<vmem>>, %arg7: memref<2x16x8xf32, #tpu.memory_space<vmem>>) attributes {dimension_semantics = [], scalar_prefetch = 0 : i64, scratch_operands = 0 : i64, tpu.core_type = #tpu.core_type<tc>} {
    %c0 = arith.constant 0 : index
    %c0_0 = arith.constant 0 : index
    %0 = vector.load %arg1[%c0, %c0_0] : memref<16x16xf32, #tpu.memory_space<vmem>>, vector<16x16xf32>
    %c0_1 = arith.constant 0 : index
    %c0_2 = arith.constant 0 : index
    %1 = vector.load %arg0[%c0_1, %c0_2] : memref<32x4xf32, #tpu.memory_space<vmem>>, vector<32x4xf32>
    %c0_3 = arith.constant 0 : index
    %c0_4 = arith.constant 0 : index
    %2 = vector.load %arg2[%c0_3, %c0_4] : memref<4x8xf32, #tpu.memory_space<vmem>>, vector<4x8xf32>
    %cst = arith.constant dense<0.000000e+00> : vector<32x8xf32>
    %3 = tpu.matmul %1, %2, %cst {dimension_numbers = #tpu.dot_dimension_numbers<[1], [0], [0], [1], [0, 0, 1, 1], [], []>} : vector<32x4xf32>, vector<4x8xf32>, vector<32x8xf32> -> vector<32x8xf32>
    %c0_5 = arith.constant 0 : index
    %c0_6 = arith.constant 0 : index
    %4 = vector.load %arg3[%c0_5, %c0_6] : memref<1x8xf32, #tpu.memory_space<vmem>>, vector<1x8xf32>
    %5 = vector.broadcast %4 : vector<1x8xf32> to vector<32x8xf32>
    %6 = arith.addf %3, %5 : vector<32x8xf32>
    %c0_7 = arith.constant 0 : index
    %c0_8 = arith.constant 0 : index
    %7 = vector.load %arg4[%c0_7, %c0_8] : memref<4x8xf32, #tpu.memory_space<vmem>>, vector<4x8xf32>
    %cst_9 = arith.constant dense<0.000000e+00> : vector<32x8xf32>
    %8 = tpu.matmul %1, %7, %cst_9 {dimension_numbers = #tpu.dot_dimension_numbers<[1], [0], [0], [1], [0, 0, 1, 1], [], []>} : vector<32x4xf32>, vector<4x8xf32>, vector<32x8xf32> -> vector<32x8xf32>
    %c0_10 = arith.constant 0 : index
    %c0_11 = arith.constant 0 : index
    %9 = vector.load %arg5[%c0_10, %c0_11] : memref<1x8xf32, #tpu.memory_space<vmem>>, vector<1x8xf32>
    %10 = vector.broadcast %9 : vector<1x8xf32> to vector<32x8xf32>
    %11 = arith.addf %8, %10 : vector<32x8xf32>
    %c0_12 = arith.constant 0 : index
    %c0_13 = arith.constant 0 : index
    %12 = vector.load %arg6[%c0_12, %c0_13] : memref<4x8xf32, #tpu.memory_space<vmem>>, vector<4x8xf32>
    %cst_14 = arith.constant dense<0.000000e+00> : vector<32x8xf32>
    %13 = tpu.matmul %1, %12, %cst_14 {dimension_numbers = #tpu.dot_dimension_numbers<[1], [0], [0], [1], [0, 0, 1, 1], [], []>} : vector<32x4xf32>, vector<4x8xf32>, vector<32x8xf32> -> vector<32x8xf32>
    %14 = vector.extract_strided_slice %6 {offsets = [0, 0], sizes = [16, 8], strides = [1, 1]} : vector<32x8xf32> to vector<16x8xf32>
    %15 = vector.extract_strided_slice %11 {offsets = [0, 0], sizes = [16, 8], strides = [1, 1]} : vector<32x8xf32> to vector<16x8xf32>
    %16 = vector.extract_strided_slice %13 {offsets = [0, 0], sizes = [16, 8], strides = [1, 1]} : vector<32x8xf32> to vector<16x8xf32>
    %cst_15 = arith.constant dense<0.000000e+00> : vector<16x16xf32>
    %17 = tpu.matmul %14, %15, %cst_15 {dimension_numbers = #tpu.dot_dimension_numbers<[1], [1], [0], [0], [0, 0, 1, 0], [], []>} : vector<16x8xf32>, vector<16x8xf32>, vector<16x16xf32> -> vector<16x16xf32>
    %cst_16 = arith.constant dense<0xFF800000> : vector<16xf32>
    %18 = vector.multi_reduction <maximumf>, %17, %cst_16 [0] : vector<16x16xf32> to vector<16xf32>
    %19 = vector.shape_cast %18 : vector<16xf32> to vector<1x16xf32>
    %20 = vector.broadcast %19 : vector<1x16xf32> to vector<16x16xf32>
    %21 = arith.subf %17, %20 : vector<16x16xf32>
    %22 = math.exp %21 : vector<16x16xf32>
    %cst_17 = arith.constant dense<0.000000e+00> : vector<16xf32>
    %23 = vector.multi_reduction <add>, %22, %cst_17 [0] : vector<16x16xf32> to vector<16xf32>
    %24 = vector.shape_cast %23 : vector<16xf32> to vector<1x16xf32>
    %25 = tpu.reciprocal %24 {approx = true} : vector<1x16xf32> -> vector<1x16xf32>
    %26 = vector.broadcast %25 : vector<1x16xf32> to vector<16x16xf32>
    %27 = arith.mulf %22, %26 : vector<16x16xf32>
    %cst_18 = arith.constant dense<0.000000e+00> : vector<16x8xf32>
    %28 = tpu.matmul %0, %16, %cst_18 {dimension_numbers = #tpu.dot_dimension_numbers<[1], [0], [0], [1], [0, 0, 1, 1], [], []>} : vector<16x16xf32>, vector<16x8xf32>, vector<16x8xf32> -> vector<16x8xf32>
    %cst_19 = arith.constant dense<0.000000e+00> : vector<16x8xf32>
    %29 = tpu.matmul %27, %28, %cst_19 {dimension_numbers = #tpu.dot_dimension_numbers<[1], [0], [0], [1], [0, 0, 1, 1], [], []>} : vector<16x16xf32>, vector<16x8xf32>, vector<16x8xf32> -> vector<16x8xf32>
    %cst_20 = arith.constant 0.000000e+00 : f32
    %30 = vector.broadcast %cst_20 : f32 to vector<16x8xf32>
    %31 = arith.maximumf %29, %30 : vector<16x8xf32>
    %c0_21 = arith.constant 0 : index
    %c0_22 = arith.constant 0 : index
    %c0_23 = arith.constant 0 : index
    %32 = vector.load %arg7[%c0_21, %c0_22, %c0_23] : memref<2x16x8xf32, #tpu.memory_space<vmem>>, vector<1x16x8xf32>
    %33 = vector.shape_cast %32 : vector<1x16x8xf32> to vector<16x8xf32>
    %34 = vector.shape_cast %31 : vector<16x8xf32> to vector<1x16x8xf32>
    tpu.vector_store %arg7[%c0_21, %c0_22, %c0_23], %34 {strides = array<i32>} : memref<2x16x8xf32, #tpu.memory_space<vmem>>, vector<1x16x8xf32>,
    %35 = vector.extract_strided_slice %6 {offsets = [16, 0], sizes = [16, 8], strides = [1, 1]} : vector<32x8xf32> to vector<16x8xf32>
    %36 = vector.extract_strided_slice %11 {offsets = [16, 0], sizes = [16, 8], strides = [1, 1]} : vector<32x8xf32> to vector<16x8xf32>
    %37 = vector.extract_strided_slice %13 {offsets = [16, 0], sizes = [16, 8], strides = [1, 1]} : vector<32x8xf32> to vector<16x8xf32>
    %cst_24 = arith.constant dense<0.000000e+00> : vector<16x16xf32>
    %38 = tpu.matmul %35, %36, %cst_24 {dimension_numbers = #tpu.dot_dimension_numbers<[1], [1], [0], [0], [0, 0, 1, 0], [], []>} : vector<16x8xf32>, vector<16x8xf32>, vector<16x16xf32> -> vector<16x16xf32>
    %cst_25 = arith.constant dense<0xFF800000> : vector<16xf32>
    %39 = vector.multi_reduction <maximumf>, %38, %cst_25 [0] : vector<16x16xf32> to vector<16xf32>
    %40 = vector.shape_cast %39 : vector<16xf32> to vector<1x16xf32>
    %41 = vector.broadcast %40 : vector<1x16xf32> to vector<16x16xf32>
    %42 = arith.subf %38, %41 : vector<16x16xf32>
    %43 = math.exp %42 : vector<16x16xf32>
    %cst_26 = arith.constant dense<0.000000e+00> : vector<16xf32>
    %44 = vector.multi_reduction <add>, %43, %cst_26 [0] : vector<16x16xf32> to vector<16xf32>
    %45 = vector.shape_cast %44 : vector<16xf32> to vector<1x16xf32>
    %46 = tpu.reciprocal %45 {approx = true} : vector<1x16xf32> -> vector<1x16xf32>
    %47 = vector.broadcast %46 : vector<1x16xf32> to vector<16x16xf32>
    %48 = arith.mulf %43, %47 : vector<16x16xf32>
    %cst_27 = arith.constant dense<0.000000e+00> : vector<16x8xf32>
    %49 = tpu.matmul %0, %37, %cst_27 {dimension_numbers = #tpu.dot_dimension_numbers<[1], [0], [0], [1], [0, 0, 1, 1], [], []>} : vector<16x16xf32>, vector<16x8xf32>, vector<16x8xf32> -> vector<16x8xf32>
    %cst_28 = arith.constant dense<0.000000e+00> : vector<16x8xf32>
    %50 = tpu.matmul %48, %49, %cst_28 {dimension_numbers = #tpu.dot_dimension_numbers<[1], [0], [0], [1], [0, 0, 1, 1], [], []>} : vector<16x16xf32>, vector<16x8xf32>, vector<16x8xf32> -> vector<16x8xf32>
    %cst_29 = arith.constant 0.000000e+00 : f32
    %51 = vector.broadcast %cst_29 : f32 to vector<16x8xf32>
    %52 = arith.maximumf %50, %51 : vector<16x8xf32>
    %c1 = arith.constant 1 : index
    %c0_30 = arith.constant 0 : index
    %c0_31 = arith.constant 0 : index
    %53 = vector.load %arg7[%c1, %c0_30, %c0_31] : memref<2x16x8xf32, #tpu.memory_space<vmem>>, vector<1x16x8xf32>
    %54 = vector.shape_cast %53 : vector<1x16x8xf32> to vector<16x8xf32>
    %55 = vector.shape_cast %52 : vector<16x8xf32> to vector<1x16x8xf32>
    tpu.vector_store %arg7[%c1, %c0_30, %c0_31], %55 {strides = array<i32>} : memref<2x16x8xf32, #tpu.memory_space<vmem>>, vector<1x16x8xf32>,
    return
  }
}

</mosaic_0001>

<llo_original>
// kernel: tpu_custom_call.1
$region0: #{tpu_custom_call.1}
  #allocation0 [shape = 'u32[]', space=smem, size = 0x4, offset = 0x4, fixed_abs, tag = 'smem constant byte address 0x4 - core index']
  #allocation1 [shape = 'u32[72,128]{1,0:T(1,128)}', space=vmem, size = 0x9000, scoped, tag = 'internal scratch']
  %s0 = inlined_call_operand.vmem [shape: f32[32,4], index: 0, kind: input, shape index: {}]
  %s1 = inlined_call_operand.vmem [shape: f32[16,16], index: 1, kind: input, shape index: {}]
  %s2 = inlined_call_operand.vmem [shape: f32[4,8], index: 2, kind: input, shape index: {}]
  %s3 = inlined_call_operand.vmem [shape: f32[1,8], index: 3, kind: input, shape index: {}]
  %s4 = inlined_call_operand.vmem [shape: f32[4,8], index: 4, kind: input, shape index: {}]
  %s5 = inlined_call_operand.vmem [shape: f32[1,8], index: 5, kind: input, shape index: {}]
  %s6 = inlined_call_operand.vmem [shape: f32[4,8], index: 6, kind: input, shape index: {}]
  %s7 = inlined_call_operand.vmem [shape: f32[2,16,8], index: 7, kind: output, shape index: {}]
  %s8 = sld [smem:[#allocation0]]
  $region38: #{tpu_custom_call.1} parent=0
    _
  %s10 = ssub.s32 1, %s8
  %s11 = scalar_select 0, %s10, %s8
  // Predicated region
  $region2: #{tpu_custom_call.1} parent=0 // pred_check
    _
  $region3: #{tpu_custom_call.1} parent=0 // pred_check_branch
    %13 = sbr.rel (0) target = $region5
  $region4: #{tpu_custom_call.1} parent=0 // pred_region
    _
  $region5: #{tpu_custom_call.1} parent=0 // pred_fallthru
    _
  // Predicated region
  $region6: #{tpu_custom_call.1} parent=0 // pred_check
    _
  $region7: #{tpu_custom_call.1} parent=0 // pred_check_branch
    %15 = sbr.rel (0) target = $region9
  $region8: #{tpu_custom_call.1} parent=0 // pred_region
    _
  $region9: #{tpu_custom_call.1} parent=0 // pred_fallthru
    _
  // Predicated region
  $region10: #{tpu_custom_call.1} parent=0 // pred_check
    _
  $region11: #{tpu_custom_call.1} parent=0 // pred_check_branch
    %17 = sbr.rel (0) target = $region13
  $region12: #{tpu_custom_call.1} parent=0 // pred_region
    _
  $region13: #{tpu_custom_call.1} parent=0 // pred_fallthru
    _
  // Predicated region
  $region14: #{tpu_custom_call.1} parent=0 // pred_check
    _
  $region15: #{tpu_custom_call.1} parent=0 // pred_check_branch
    %19 = sbr.rel (0) target = $region17
  $region16: #{tpu_custom_call.1} parent=0 // pred_region
    _
  $region17: #{tpu_custom_call.1} parent=0 // pred_fallthru
    _
  // Predicated region
  $region18: #{tpu_custom_call.1} parent=0 // pred_check
    _
  $region19: #{tpu_custom_call.1} parent=0 // pred_check_branch
    %21 = sbr.rel (0) target = $region21
  $region20: #{tpu_custom_call.1} parent=0 // pred_region
    _
  $region21: #{tpu_custom_call.1} parent=0 // pred_fallthru
    _
  // Predicated region
  $region22: #{tpu_custom_call.1} parent=0 // pred_check
    _
  $region23: #{tpu_custom_call.1} parent=0 // pred_check_branch
    %23 = sbr.rel (0) target = $region25
  $region24: #{tpu_custom_call.1} parent=0 // pred_region
    _
  $region25: #{tpu_custom_call.1} parent=0 // pred_fallthru
    _
  // Predicated region
  $region26: #{tpu_custom_call.1} parent=0 // pred_check
    _
  $region27: #{tpu_custom_call.1} parent=0 // pred_check_branch
    %25 = sbr.rel (0) target = $region29
  $region28: #{tpu_custom_call.1} parent=0 // pred_region
    _
  $region29: #{tpu_custom_call.1} parent=0 // pred_fallthru
    _
  %v26 = vld [vmem:[%s1] sm:$0xff]
  %v27 = vld [vmem:[%s1 + $0x8] sm:$0xff]
  %v28 = vld [vmem:[%s0] sm:$0xff]
  %v29 = vld [vmem:[%s0 + $0x8] sm:$0xff]
  %v30 = vld [vmem:[%s0 + $0x10] sm:$0xff]
  %v31 = vld [vmem:[%s0 + $0x18] sm:$0xff]
  %v32 = vld [vmem:[%s2] sm:$0xf]
  %v33 = vld [vmem:[%s3] sm:$0x1]
  %v35 = vperm.slane %v33, 0
  %vm37 = vcmask 31744
  %v39 = vsel %vm37, %v28, 0
  %v42 = vsel %vm37, %v29, 0
  %v45 = vsel %vm37, %v30, 0
  %v48 = vsel %vm37, %v31, 0
  %vm50 = vcmask 1043456
  %v52 = vsel %vm50, %v32, 0
  %54 = vmatpush.msra.mxu0 0.0
  %55 = vmatpush.msra.mxu0 0.0
  %56 = vmatpush.msra.mxu0 0.0
  %57 = vmatpush.msra.mxu0 0.0
  %58 = vmatpush.msra.mxu0 0.0
  %59 = vmatpush.msra.mxu0 0.0
  %60 = vmatpush.msra.mxu0 0.0
  %61 = vmatpush.msra.mxu0 0.0
  %62 = vmatpush.msra.mxu0 0.0
  %63 = vmatpush.msra.mxu0 0.0
  %64 = vmatpush.msra.mxu0 0.0
  %65 = vmatpush.msra.mxu0 0.0
  %66 = vmatpush.msra.mxu0 0.0
  %67 = vmatpush.msra.mxu0 0.0
  %68 = vmatpush.msra.mxu0 0.0
  %69 = vmatpush.msra.mxu0 %v52
  %70 = vmatmul.f32.gmra.mxu0 %v39
  %v71 = vpop.f32.mrf.mxu0
  %v72 = vadd.f32 %v35, %v71
  %73 = vmatmul.f32.gmra.mxu0 %v42
  %v74 = vpop.f32.mrf.mxu0
  %v75 = vadd.f32 %v35, %v74
  %76 = vmatmul.f32.gmra.mxu0 %v45
  %v77 = vpop.f32.mrf.mxu0
  %v78 = vadd.f32 %v35, %v77
  %79 = vmatmul.f32.gmra.mxu0 %v48
  %v80 = vpop.f32.mrf.mxu0
  %v81 = vadd.f32 %v35, %v80
  %82 = vdwg.mxu0
  %v83 = vld [vmem:[%s4] sm:$0xf]
  %v84 = vld [vmem:[%s5] sm:$0x1]
  %v86 = vperm.slane %v84, 0
  %v89 = vsel %vm50, %v83, 0
  %91 = vmatpush.msra.mxu0 0.0
  %92 = vmatpush.msra.mxu0 0.0
  %93 = vmatpush.msra.mxu0 0.0
  %94 = vmatpush.msra.mxu0 0.0
  %95 = vmatpush.msra.mxu0 0.0
  %96 = vmatpush.msra.mxu0 0.0
  %97 = vmatpush.msra.mxu0 0.0
  %98 = vmatpush.msra.mxu0 0.0
  %99 = vmatpush.msra.mxu0 0.0
  %100 = vmatpush.msra.mxu0 0.0
  %101 = vmatpush.msra.mxu0 0.0
  %102 = vmatpush.msra.mxu0 0.0
  %103 = vmatpush.msra.mxu0 0.0
  %104 = vmatpush.msra.mxu0 0.0
  %105 = vmatpush.msra.mxu0 0.0
  %106 = vmatpush.msra.mxu0 %v89
  %107 = vmatmul.f32.gmra.mxu0 %v39
  %v108 = vpop.f32.mrf.mxu0
  %v109 = vadd.f32 %v86, %v108
  %110 = vmatmul.f32.gmra.mxu0 %v42
  %v111 = vpop.f32.mrf.mxu0
  %v112 = vadd.f32 %v86, %v111
  %113 = vmatmul.f32.gmra.mxu0 %v45
  %v114 = vpop.f32.mrf.mxu0
  %v115 = vadd.f32 %v86, %v114
  %116 = vmatmul.f32.gmra.mxu0 %v48
  %v117 = vpop.f32.mrf.mxu0
  %v118 = vadd.f32 %v86, %v117
  %119 = vdwg.mxu0
  %v120 = vld [vmem:[%s6] sm:$0xf]
  %v122 = vsel %vm50, %v120, 0
  %124 = vmatpush.msra.mxu0 0.0
  %125 = vmatpush.msra.mxu0 0.0
  %126 = vmatpush.msra.mxu0 0.0
  %127 = vmatpush.msra.mxu0 0.0
  %128 = vmatpush.msra.mxu0 0.0
  %129 = vmatpush.msra.mxu0 0.0
  %130 = vmatpush.msra.mxu0 0.0
  %131 = vmatpush.msra.mxu0 0.0
  %132 = vmatpush.msra.mxu0 0.0
  %133 = vmatpush.msra.mxu0 0.0
  %134 = vmatpush.msra.mxu0 0.0
  %135 = vmatpush.msra.mxu0 0.0
  %136 = vmatpush.msra.mxu0 0.0
  %137 = vmatpush.msra.mxu0 0.0
  %138 = vmatpush.msra.mxu0 0.0
  %139 = vmatpush.msra.mxu0 %v122
  %140 = vmatmul.f32.gmra.mxu0 %v39
  %v141 = vpop.f32.mrf.mxu0
  %v142 = vadd.f32 0.0, %v141
  %143 = vmatmul.f32.gmra.mxu0 %v42
  %v144 = vpop.f32.mrf.mxu0
  %v145 = vadd.f32 0.0, %v144
  %146 = vmatmul.f32.gmra.mxu0 %v45
  %v147 = vpop.f32.mrf.mxu0
  %v148 = vadd.f32 0.0, %v147
  %149 = vmatmul.f32.gmra.mxu0 %v48
  %v150 = vpop.f32.mrf.mxu0
  %v151 = vadd.f32 0.0, %v150
  %152 = vdwg.mxu0
  %vm153 = vcmask 64512
  %v155 = vsel %vm153, %v72, 0
  %v158 = vsel %vm153, %v75, 0
  %v161 = vsel %vm153, %v109, 0
  %v164 = vsel %vm153, %v112, 0
  %166 = vmatpush.xpose.msra.mxu0 0.0
  %167 = vmatpush.xpose.msra.mxu0 0.0
  %168 = vmatpush.xpose.msra.mxu0 0.0
  %169 = vmatpush.xpose.msra.mxu0 0.0
  %170 = vmatpush.xpose.msra.mxu0 0.0
  %171 = vmatpush.xpose.msra.mxu0 0.0
  %172 = vmatpush.xpose.msra.mxu0 0.0
  %173 = vmatpush.xpose.msra.mxu0 0.0
  %174 = vmatpush.xpose.msra.mxu0 0.0
  %175 = vmatpush.xpose.msra.mxu0 0.0
  %176 = vmatpush.xpose.msra.mxu0 0.0
  %177 = vmatpush.xpose.msra.mxu0 0.0
  %178 = vmatpush.xpose.msra.mxu0 0.0
  %179 = vmatpush.xpose.msra.mxu0 0.0
  %180 = vmatpush.xpose.msra.mxu0 %v164
  %181 = vmatpush.xpose.msra.mxu0 %v161
  %182 = vmatmul.f32.gmra.mxu0 %v155
  %v183 = vpop.f32.mrf.mxu0
  %v184 = vadd.f32 0.0, %v183
  %185 = vmatmul.f32.gmra.mxu0 %v158
  %v186 = vpop.f32.mrf.mxu0
  %v187 = vadd.f32 0.0, %v186
  %188 = vdwg.mxu0
  %vm189 = vcmask 130048
  %v190 = vsel %vm189, %v184, -inf
  %v191 = vsel %vm189, %v187, -inf
  %v192 = vmax.f32 %v190, %v191
  %v193 = vrot.slane %v192, 4
  %v194 = vmax.f32 %v192, %v193
  %v195 = vrot.slane %v194, 2
  %v196 = vmax.f32 %v194, %v195
  %v197 = vrot.slane %v196, 1
  %v198 = vmax.f32 %v196, %v197
  %v199 = vsub.f32 %v184, %v198
  %v200 = vsub.f32 %v187, %v198
  %v201 = vmul.f32 %v199, 1.442695
  %v202 = vpow.pop %v201
  %v203 = vmul.f32 %v200, 1.442695
  %v204 = vpow.pop %v203
  %v205 = vsel %vm189, %v202, 0.0
  %v206 = vsel %vm189, %v204, 0.0
  %v207 = vadd.f32 %v205, %v206
  %v208 = vrot.slane %v207, 4
  %v209 = vadd.f32 %v207, %v208
  %v210 = vrot.slane %v209, 2
  %v211 = vadd.f32 %v209, %v210
  %v212 = vrot.slane %v211, 1
  %v213 = vadd.f32 %v211, %v212
  %v214 = vrcp.pop %v213
  %v215 = vmul.f32 %v202, %v214
  %v216 = vmul.f32 %v204, %v214
  %v218 = vsel %vm189, %v26, 0
  %v221 = vsel %vm189, %v27, 0
  %223 = vmatpush.msra.mxu0 0.0
  %224 = vmatpush.msra.mxu0 0.0
  %225 = vmatpush.msra.mxu0 0.0
  %226 = vmatpush.msra.mxu0 0.0
  %227 = vmatpush.msra.mxu0 0.0
  %228 = vmatpush.msra.mxu0 0.0
  %229 = vmatpush.msra.mxu0 0.0
  %230 = vmatpush.msra.mxu0 0.0
  %231 = vmatpush.msra.mxu0 0.0
  %232 = vmatpush.msra.mxu0 0.0
  %233 = vmatpush.msra.mxu0 0.0
  %234 = vmatpush.msra.mxu0 0.0
  %235 = vmatpush.msra.mxu0 0.0
  %236 = vmatpush.msra.mxu0 0.0
  %237 = vmatpush.msra.mxu0 %v145
  %238 = vmatpush.msra.mxu0 %v142
  %239 = vmatmul.f32.gmra.mxu0 %v218
  %v240 = vpop.f32.mrf.mxu0
  %v241 = vadd.f32 0.0, %v240
  %242 = vmatmul.f32.gmra.mxu0 %v221
  %v243 = vpop.f32.mrf.mxu0
  %v244 = vadd.f32 0.0, %v243
  %245 = vdwg.mxu0
  %v247 = vsel %vm189, %v215, 0
  %v250 = vsel %vm189, %v216, 0
  %252 = vmatpush.msra.mxu0 0.0
  %253 = vmatpush.msra.mxu0 0.0
  %254 = vmatpush.msra.mxu0 0.0
  %255 = vmatpush.msra.mxu0 0.0
  %256 = vmatpush.msra.mxu0 0.0
  %257 = vmatpush.msra.mxu0 0.0
  %258 = vmatpush.msra.mxu0 0.0
  %259 = vmatpush.msra.mxu0 0.0
  %260 = vmatpush.msra.mxu0 0.0
  %261 = vmatpush.msra.mxu0 0.0
  %262 = vmatpush.msra.mxu0 0.0
  %263 = vmatpush.msra.mxu0 0.0
  %264 = vmatpush.msra.mxu0 0.0
  %265 = vmatpush.msra.mxu0 0.0
  %266 = vmatpush.msra.mxu0 %v244
  %267 = vmatpush.msra.mxu0 %v241
  %268 = vmatmul.f32.gmra.mxu0 %v247
  %v269 = vpop.f32.mrf.mxu0
  %v270 = vadd.f32 0.0, %v269
  %271 = vmatmul.f32.gmra.mxu0 %v250
  %v272 = vpop.f32.mrf.mxu0
  %v273 = vadd.f32 0.0, %v272
  %274 = vdwg.mxu0
  %v275 = vmax.f32 %v270, 0.0
  %v276 = vmax.f32 %v273, 0.0
  %277 = vst.msk [vmem:[%s7] sm:$0xff] %vm153, %v275
  %278 = vst.msk [vmem:[%s7 + $0x8] sm:$0xff] %vm153, %v276
  %v280 = vsel %vm153, %v78, 0
  %v283 = vsel %vm153, %v81, 0
  %v286 = vsel %vm153, %v115, 0
  %v289 = vsel %vm153, %v118, 0
  %291 = vmatpush.xpose.msra.mxu0 0.0
  %292 = vmatpush.xpose.msra.mxu0 0.0
  %293 = vmatpush.xpose.msra.mxu0 0.0
  %294 = vmatpush.xpose.msra.mxu0 0.0
  %295 = vmatpush.xpose.msra.mxu0 0.0
  %296 = vmatpush.xpose.msra.mxu0 0.0
  %297 = vmatpush.xpose.msra.mxu0 0.0
  %298 = vmatpush.xpose.msra.mxu0 0.0
  %299 = vmatpush.xpose.msra.mxu0 0.0
  %300 = vmatpush.xpose.msra.mxu0 0.0
  %301 = vmatpush.xpose.msra.mxu0 0.0
  %302 = vmatpush.xpose.msra.mxu0 0.0
  %303 = vmatpush.xpose.msra.mxu0 0.0
  %304 = vmatpush.xpose.msra.mxu0 0.0
  %305 = vmatpush.xpose.msra.mxu0 %v289
  %306 = vmatpush.xpose.msra.mxu0 %v286
  %307 = vmatmul.f32.gmra.mxu0 %v280
  %v308 = vpop.f32.mrf.mxu0
  %v309 = vadd.f32 0.0, %v308
  %310 = vmatmul.f32.gmra.mxu0 %v283
  %v311 = vpop.f32.mrf.mxu0
  %v312 = vadd.f32 0.0, %v311
  %313 = vdwg.mxu0
  %v314 = vsel %vm189, %v309, -inf
  %v315 = vsel %vm189, %v312, -inf
  %v316 = vmax.f32 %v314, %v315
  %v317 = vrot.slane %v316, 4
  %v318 = vmax.f32 %v316, %v317
  %v319 = vrot.slane %v318, 2
  %v320 = vmax.f32 %v318, %v319
  %v321 = vrot.slane %v320, 1
  %v322 = vmax.f32 %v320, %v321
  %v323 = vsub.f32 %v309, %v322
  %v324 = vsub.f32 %v312, %v322
  %v325 = vmul.f32 %v323, 1.442695
  %v326 = vpow.pop %v325
  %v327 = vmul.f32 %v324, 1.442695
  %v328 = vpow.pop %v327
  %v329 = vsel %vm189, %v326, 0.0
  %v330 = vsel %vm189, %v328, 0.0
  %v331 = vadd.f32 %v329, %v330
  %v332 = vrot.slane %v331, 4
  %v333 = vadd.f32 %v331, %v332
  %v334 = vrot.slane %v333, 2
  %v335 = vadd.f32 %v333, %v334
  %v336 = vrot.slane %v335, 1
  %v337 = vadd.f32 %v335, %v336
  %v338 = vrcp.pop %v337
  %v339 = vmul.f32 %v326, %v338
  %v340 = vmul.f32 %v328, %v338
  %341 = vmatpush.msra.mxu0 0.0
  %342 = vmatpush.msra.mxu0 0.0
  %343 = vmatpush.msra.mxu0 0.0
  %344 = vmatpush.msra.mxu0 0.0
  %345 = vmatpush.msra.mxu0 0.0
  %346 = vmatpush.msra.mxu0 0.0
  %347 = vmatpush.msra.mxu0 0.0
  %348 = vmatpush.msra.mxu0 0.0
  %349 = vmatpush.msra.mxu0 0.0
  %350 = vmatpush.msra.mxu0 0.0
  %351 = vmatpush.msra.mxu0 0.0
  %352 = vmatpush.msra.mxu0 0.0
  %353 = vmatpush.msra.mxu0 0.0
  %354 = vmatpush.msra.mxu0 0.0
  %355 = vmatpush.msra.mxu0 %v151
  %356 = vmatpush.msra.mxu0 %v148
  %357 = vmatmul.f32.gmra.mxu0 %v218
  %v358 = vpop.f32.mrf.mxu0
  %v359 = vadd.f32 0.0, %v358
  %360 = vmatmul.f32.gmra.mxu0 %v221
  %v361 = vpop.f32.mrf.mxu0
  %v362 = vadd.f32 0.0, %v361
  %363 = vdwg.mxu0
  %v365 = vsel %vm189, %v339, 0
  %v368 = vsel %vm189, %v340, 0
  %370 = vmatpush.msra.mxu0 0.0
  %371 = vmatpush.msra.mxu0 0.0
  %372 = vmatpush.msra.mxu0 0.0
  %373 = vmatpush.msra.mxu0 0.0
  %374 = vmatpush.msra.mxu0 0.0
  %375 = vmatpush.msra.mxu0 0.0
  %376 = vmatpush.msra.mxu0 0.0
  %377 = vmatpush.msra.mxu0 0.0
  %378 = vmatpush.msra.mxu0 0.0
  %379 = vmatpush.msra.mxu0 0.0
  %380 = vmatpush.msra.mxu0 0.0
  %381 = vmatpush.msra.mxu0 0.0
  %382 = vmatpush.msra.mxu0 0.0
  %383 = vmatpush.msra.mxu0 0.0
  %384 = vmatpush.msra.mxu0 %v362
  %385 = vmatpush.msra.mxu0 %v359
  %386 = vmatmul.f32.gmra.mxu0 %v365
  %v387 = vpop.f32.mrf.mxu0
  %v388 = vadd.f32 0.0, %v387
  %389 = vmatmul.f32.gmra.mxu0 %v368
  %v390 = vpop.f32.mrf.mxu0
  %v391 = vadd.f32 0.0, %v390
  %392 = vdwg.mxu0
  %v393 = vmax.f32 %v388, 0.0
  %v394 = vmax.f32 %v391, 0.0
  %s395 = scalar_lea.vmem %s7, 16
  %396 = vst.msk [vmem:[%s395] sm:$0xff] %vm153, %v393
  %397 = vst.msk [vmem:[%s395 + $0x8] sm:$0xff] %vm153, %v394
  // Predicated region
  $region30: #{tpu_custom_call.1} parent=0 // pred_check
    _
  $region31: #{tpu_custom_call.1} parent=0 // pred_check_branch
    %399 = sbr.rel (0) target = $region33
  $region32: #{tpu_custom_call.1} parent=0 // pred_region
    _
  $region33: #{tpu_custom_call.1} parent=0 // pred_fallthru
    _
  // Predicated region
  $region34: #{tpu_custom_call.1} parent=0 // pred_check
    _
  $region35: #{tpu_custom_call.1} parent=0 // pred_check_branch
    %401 = sbr.rel (0) target = $region37
  $region36: #{tpu_custom_call.1} parent=0 // pred_region
    _
  $region37: #{tpu_custom_call.1} parent=0 // pred_fallthru
    _

</llo_original>
